<compile_context>
chip_gen: v5e
topology: v5e:2x2
jax: 0.10.0
libtpu: 0.0.40
codegen_flags: <defaults>
</compile_context>

<pallas_src>
import functools

import jax
import jax.numpy as jnp
from jax.experimental import pallas as pl
from jax.experimental.pallas import tpu as pltpu


# ----------------------------- shared kernel helpers ----------------------- #

def _conv_tile(x_ref, w_ref, col0, K, TL):
    """Pre-bias Conv1d for one lane-dense width tile.

    x_ref: (C_in_p, Xw) bf16 padded input row (Xw = Lp + 128, so the aligned
    window load below is always in-bounds).  w_ref: (K, C_out, C_in_p) bf16.
    Loads one 128-aligned window (tile + halo) and does K small MXU matmuls
    against static lane-offset views.  Returns (C_out, TL) f32 (no bias).
    """
    C_out = w_ref.shape[1]
    xw = x_ref[:, pl.ds(col0, TL + 128)]          # aligned dynamic window + halo
    acc = jnp.zeros((C_out, TL), jnp.float32)
    for k in range(K):                            # K is small & static
        acc += jnp.dot(w_ref[k], xw[:, k:k + TL],
                       preferred_element_type=jnp.float32)
    return acc


def _accum_stats(acc, s1_ref, s2_ref, j, L, TL, n_tiles):
    """Accumulate per-channel sum / sum-of-squares of the pre-bias conv output.

    Only the last width tile can contain padding columns, so the
    iota/compare/select mask is emitted only there; other tiles use unmasked sums.
    """
    def add(vals):
        s1_ref[...] += jnp.sum(vals, axis=1, keepdims=True)
        s2_ref[...] += jnp.sum(vals * vals, axis=1, keepdims=True)

    if L % TL == 0:                               # no padding columns at all
        add(acc)
    else:
        @pl.when(j < n_tiles - 1)
        def _():
            add(acc)

        @pl.when(j == n_tiles - 1)
        def _():
            valid = L - (n_tiles - 1) * TL
            col = jax.lax.broadcasted_iota(jnp.int32, acc.shape, 1)
            add(jnp.where(col < valid, acc, 0.0))


def _bn_scale_shift(s1, s2, b, g, be, count, eps):
    """Training-mode BatchNorm (biased variance) folded into per-channel scale/shift.

    s1/s2 are sums of the *pre-bias* conv output (shifted sums -> less cancellation);
    the known conv bias b is added back analytically to recover the mean of y.
    """
    inv_count = 1.0 / count
    mean0 = s1 * inv_count                        # mean of pre-bias conv
    var = s2 * inv_count - mean0 * mean0          # biased variance (shift-invariant)
    inv_std = jax.lax.rsqrt(var + eps)
    scale = g * inv_std
    shift = be - (mean0 + b) * scale
    return scale, shift


# ----------------------------- fused single-pass kernel -------------------- #

def fused_kernel(x_ref, w_ref, b_ref, g_ref, be_ref, o_ref,
                 y_slab, s1_ref, s2_ref, *, K, L, TL, Lp, n_tiles, count, eps):
    """Grid (2, N, n_tiles).  Phase 0: conv into a resident VMEM slab + stats.
    Phase 1: normalize + affine + ReLU from the slab, write (n, :, tile) output."""
    p = pl.program_id(0)
    n = pl.program_id(1)
    j = pl.program_id(2)

    @pl.when((p == 0) & (n == 0) & (j == 0))
    def _():
        s1_ref[...] = jnp.zeros(s1_ref.shape, s1_ref.dtype)
        s2_ref[...] = jnp.zeros(s2_ref.shape, s2_ref.dtype)

    col0 = pl.multiple_of(j * TL, 128)
    off = pl.multiple_of(n * Lp + j * TL, 128)    # slab lane offset (batch folded)

    @pl.when(p == 0)
    def _():
        acc = _conv_tile(x_ref, w_ref, col0, K, TL)
        _accum_stats(acc, s1_ref, s2_ref, j, L, TL, n_tiles)
        y_slab[:, pl.ds(off, TL)] = acc + b_ref[...]

    @pl.when(p == 1)
    def _():
        scale, shift = _bn_scale_shift(s1_ref[...], s2_ref[...], b_ref[...],
                                       g_ref[...], be_ref[...], count, eps)
        y = y_slab[:, pl.ds(off, TL)]
        o_ref[...] = jnp.maximum(y * scale + shift, 0.0).astype(o_ref.dtype)


# ----------------------------- 2-pass fallback kernels --------------------- #

def conv_stats_kernel(x_ref, w_ref, b_ref, y_ref, s1_ref, s2_ref,
                      *, K, L, TL, n_tiles):
    """Fallback pass 1: conv tile (bf16-staged to HBM) + stats accumulation."""
    n = pl.program_id(0)
    j = pl.program_id(1)

    @pl.when((n == 0) & (j == 0))
    def _():
        s1_ref[...] = jnp.zeros(s1_ref.shape, s1_ref.dtype)
        s2_ref[...] = jnp.zeros(s2_ref.shape, s2_ref.dtype)

    col0 = pl.multiple_of(j * TL, 128)
    acc = _conv_tile(x_ref, w_ref, col0, K, TL)
    _accum_stats(acc, s1_ref, s2_ref, j, L, TL, n_tiles)
    y_ref[...] = (acc + b_ref[...]).astype(y_ref.dtype)      # bf16 staging


def bn_relu_kernel(y_ref, b_ref, s1_ref, s2_ref, g_ref, be_ref, o_ref,
                   *, count, eps):
    """Fallback pass 2: normalize + affine + ReLU ('parallel' over (N, tiles))."""
    scale, shift = _bn_scale_shift(s1_ref[...], s2_ref[...], b_ref[...],
                                   g_ref[...], be_ref[...], count, eps)
    y = y_ref[...].astype(jnp.float32)
    o_ref[...] = jnp.maximum(y * scale + shift, 0.0).astype(o_ref.dtype)


# ------------------------------- Wrapper ----------------------------------- #

def conv_block(x, w, b, gamma, beta, eps=1e-5, *,
               matmul_dtype=jnp.bfloat16, force_two_pass=False):
    """ConvBlock forward: Conv1d(same, stride=1) -> BatchNorm1d(batch stats) -> ReLU."""
    N, C_in, L = x.shape
    C_out, C_in_w, K = w.shape
    assert C_in_w == C_in
    assert K <= 128, "halo window assumes kernel_size <= 128"

    LANE = 128
    TL = min(1024, pl.cdiv(L, LANE) * LANE)       # lane-dense width tile (<=1024)
    n_tiles = pl.cdiv(L, TL)
    Lp = n_tiles * TL                             # per-batch padded length
    Xw = Lp + 128                                 # padded row incl. halo (aligned loads)

    # PyTorch 'same' padding for stride=1: left = (K-1)//2 (rest goes right).
    pad_left = (K - 1) // 2

    # Contraction-dim (sublane) alignment: 16 for bf16 packing, 8 for f32.
    sub = 16 if matmul_dtype == jnp.bfloat16 else 8
    itm = 2 if matmul_dtype == jnp.bfloat16 else 4
    C_in_p = ((C_in + sub - 1) // sub) * sub

    x_p = jnp.pad(x, ((0, 0), (0, C_in_p - C_in),
                      (pad_left, Xw - pad_left - L))).astype(matmul_dtype)
    w_r = jnp.pad(w, ((0, 0), (0, C_in_p - C_in), (0, 0))
                  ).transpose(2, 0, 1).astype(matmul_dtype)    # (K, C_out, C_in_p)
    b2 = b.reshape(C_out, 1).astype(jnp.float32)
    g2 = gamma.reshape(C_out, 1).astype(jnp.float32)
    be2 = beta.reshape(C_out, 1).astype(jnp.float32)

    count = float(N * L)

    # Fused-path VMEM budget (slab + double-buffered x row / out tile + weights);
    # conservative so it fits the 32 MiB scoped default on v5e/v6e/v7x.
    slab_bytes = C_out * N * Lp * 4
    fused_vmem = (slab_bytes + 2 * C_in_p * Xw * itm + 2 * C_out * TL * 4
                  + K * C_out * C_in_p * itm + (1 << 16))
    use_fused = (not force_two_pass) and fused_vmem <= 24 * 1024 * 1024

    if use_fused:
        out = pl.pallas_call(
            functools.partial(fused_kernel, K=K, L=L, TL=TL, Lp=Lp,
                              n_tiles=n_tiles, count=count, eps=float(eps)),
            out_shape=jax.ShapeDtypeStruct((N, C_out, Lp), jnp.float32),
            grid_spec=pltpu.PrefetchScalarGridSpec(
                num_scalar_prefetch=0,
                grid=(2, N, n_tiles),                 # (phase, batch, L tile)
                in_specs=[
                    # Per-batch padded row; resident across L tiles; pinned to
                    # batch 0 during phase 1 so it isn't re-fetched per batch.
                    pl.BlockSpec((None, C_in_p, Xw),
                                 lambda p, n, j: ((1 - p) * n, 0, 0)),
                    pl.BlockSpec((K, C_out, C_in_p), lambda p, n, j: (0, 0, 0)),
                    pl.BlockSpec((C_out, 1), lambda p, n, j: (0, 0)),
                    pl.BlockSpec((C_out, 1), lambda p, n, j: (0, 0)),
                    pl.BlockSpec((C_out, 1), lambda p, n, j: (0, 0)),
                ],
                # Phase 0 pins the output block to (0,0,0) (stays resident, never
                # written back); phase 1 writes each (n, :, tile) block once, so
                # no garbage ever reaches HBM and the layout is already (N,C_out,Lp).
                out_specs=pl.BlockSpec((None, C_out, TL),
                                       lambda p, n, j: (p * n, 0, p * j)),
                scratch_shapes=[
                    pltpu.VMEM((C_out, N * Lp), jnp.float32),   # conv slab (batch folded)
                    pltpu.VMEM((C_out, 1), jnp.float32),        # per-channel sum
                    pltpu.VMEM((C_out, 1), jnp.float32),        # per-channel sum-sq
                ],
            ),
            # Phase ordering + shared stat accumulators require 'arbitrary' axes.
            # (v7x dual-TC would need per-core stat partials; not done here.)
            compiler_params=pltpu.CompilerParams(
                dimension_semantics=("arbitrary", "arbitrary", "arbitrary")),
        )(x_p, w_r, b2, g2, be2)
    else:
        # ---- Fallback: 2-pass, bf16-staged intermediate in HBM ----
        y_bf16, s1, s2 = pl.pallas_call(
            functools.partial(conv_stats_kernel, K=K, L=L, TL=TL, n_tiles=n_tiles),
            out_shape=(
                jax.ShapeDtypeStruct((N, C_out, Lp), jnp.bfloat16),
                jax.ShapeDtypeStruct((C_out, 1), jnp.float32),
                jax.ShapeDtypeStruct((C_out, 1), jnp.float32),
            ),
            grid_spec=pltpu.PrefetchScalarGridSpec(
                num_scalar_prefetch=0,
                grid=(N, n_tiles),
                in_specs=[
                    pl.BlockSpec((None, C_in_p, Xw), lambda n, j: (n, 0, 0)),
                    pl.BlockSpec((K, C_out, C_in_p), lambda n, j: (0, 0, 0)),
                    pl.BlockSpec((C_out, 1), lambda n, j: (0, 0)),
                ],
                out_specs=(
                    pl.BlockSpec((None, C_out, TL), lambda n, j: (n, 0, j)),
                    pl.BlockSpec((C_out, 1), lambda n, j: (0, 0)),   # revisited acc
                    pl.BlockSpec((C_out, 1), lambda n, j: (0, 0)),   # revisited acc
                ),
            ),
            compiler_params=pltpu.CompilerParams(
                dimension_semantics=("arbitrary", "arbitrary")),
        )(x_p, w_r, b2)

        out = pl.pallas_call(
            functools.partial(bn_relu_kernel, count=count, eps=float(eps)),
            out_shape=jax.ShapeDtypeStruct((N, C_out, Lp), jnp.float32),
            grid_spec=pltpu.PrefetchScalarGridSpec(
                num_scalar_prefetch=0,
                grid=(N, n_tiles),
                in_specs=[
                    pl.BlockSpec((None, C_out, TL), lambda n, j: (n, 0, j)),
                    pl.BlockSpec((C_out, 1), lambda n, j: (0, 0)),
                    pl.BlockSpec((C_out, 1), lambda n, j: (0, 0)),
                    pl.BlockSpec((C_out, 1), lambda n, j: (0, 0)),
                    pl.BlockSpec((C_out, 1), lambda n, j: (0, 0)),
                    pl.BlockSpec((C_out, 1), lambda n, j: (0, 0)),
                ],
                out_specs=pl.BlockSpec((None, C_out, TL), lambda n, j: (n, 0, j)),
            ),
            compiler_params=pltpu.CompilerParams(
                dimension_semantics=("parallel", "parallel")),
        )(y_bf16, b2, s1, s2, g2, be2)

    # Already in (N, C_out, Lp) layout; drop the lane padding (no-op when L % 128 == 0).
    return out[:, :, :L] if Lp != L else out


# ---------------------------- Pure-JAX reference ---------------------------- #

def conv_block_ref(x, w, b, gamma, beta, eps=1e-5, conv_dtype=jnp.float32):
    """Reference ConvBlock; conv_dtype controls conv operand precision (f32 acc)."""
    K = w.shape[2]
    pad_left = (K - 1) // 2
    pad_right = (K - 1) - pad_left
    y = jax.lax.conv_general_dilated(
        x.astype(conv_dtype), w.astype(conv_dtype),
        window_strides=(1,), padding=((pad_left, pad_right),),
        dimension_numbers=("NCH", "OIH", "NCH"),
        preferred_element_type=jnp.float32,
    ) + b[None, :, None]
    mean = jnp.mean(y, axis=(0, 2), keepdims=True)
    var = jnp.mean((y - mean) ** 2, axis=(0, 2), keepdims=True)   # biased variance
    out = (y - mean) * jax.lax.rsqrt(var + eps) * gamma[None, :, None] + beta[None, :, None]
    return jnp.maximum(out, 0.0)


# --------------------------------- Main ------------------------------------ #

if __name__ == "__main__":
    N, C_in, C_out, L, K = 2, 4, 8, 16, 3

    key = jax.random.PRNGKey(0)
    kx, kw, kb = jax.random.split(key, 3)

    x = jax.random.normal(kx, (N, C_in, L), dtype=jnp.float32)
    # Deterministic synthetic parameters (not a checkpoint load).
    w = 0.1 * jax.random.normal(kw, (C_out, C_in, K), dtype=jnp.float32)
    b = 0.1 * jax.random.normal(kb, (C_out,), dtype=jnp.float32)
    gamma = jnp.ones((C_out,), dtype=jnp.float32)   # PyTorch BN default init
    beta = jnp.zeros((C_out,), dtype=jnp.float32)

    # Fused single-pass path (conv slab kept in VMEM).
    out_fused = jax.block_until_ready(conv_block(x, w, b, gamma, beta))
    # 2-pass bf16-staged fallback path (forced so it is also exercised/validated).
    out_2pass = jax.block_until_ready(
        conv_block(x, w, b, gamma, beta, force_two_pass=True))

    # Reference with matching bf16 conv-operand precision (tight check) ...
    ref_matched = jax.block_until_ready(
        conv_block_ref(x, w, b, gamma, beta, conv_dtype=jnp.bfloat16))
    # ... and the full-f32 PyTorch-semantics reference (loose check: bf16 MXU operands).
    ref_f32 = jax.block_until_ready(
        conv_block_ref(x, w, b, gamma, beta, conv_dtype=jnp.float32))

    assert out_fused.shape == (N, C_out, L)
    assert out_2pass.shape == (N, C_out, L)
    assert jnp.allclose(out_fused, ref_matched, atol=2e-3, rtol=2e-3), \
        "fused Pallas output mismatch vs precision-matched reference"
    assert jnp.allclose(out_fused, ref_f32, atol=5e-2, rtol=5e-2), \
        "fused Pallas output mismatch vs f32 reference"
    assert jnp.allclose(out_2pass, ref_f32, atol=5e-2, rtol=5e-2), \
        "2-pass Pallas output mismatch vs f32 reference"

    # TODO(synk): BatchNorm1d running_mean/running_var buffer updates (a training-time
    # side effect of the PyTorch module, not part of the returned tensor) are not emitted.
    print("KERNEL_OK")
</pallas_src>

<mosaic_0001>
module attributes {stable_mosaic.version = 11 : i64} {
  func.func @fused_kernel(%arg0: i32, %arg1: i32, %arg2: i32, %arg3: memref<1x16x256xbf16, #tpu.memory_space<vmem>>, %arg4: memref<3x8x16xbf16, #tpu.memory_space<vmem>>, %arg5: memref<8x1xf32, #tpu.memory_space<vmem>>, %arg6: memref<8x1xf32, #tpu.memory_space<vmem>>, %arg7: memref<8x1xf32, #tpu.memory_space<vmem>>, %arg8: memref<1x8x128xf32, #tpu.memory_space<vmem>>, %arg9: memref<8x256xf32, #tpu.memory_space<vmem>>, %arg10: memref<8x1xf32, #tpu.memory_space<vmem>>, %arg11: memref<8x1xf32, #tpu.memory_space<vmem>>) attributes {dimension_semantics = [#tpu.dimension_semantics<arbitrary>, #tpu.dimension_semantics<arbitrary>, #tpu.dimension_semantics<arbitrary>], iteration_bounds = array<i64: 2, 2, 1>, scalar_prefetch = 0 : i64, scratch_operands = 3 : i64, tpu.core_type = #tpu.core_type<tc>, window_params = [{transform_indices = @transform_0, window_bounds = array<i64: 1, 16, 256>}, {pipeline_mode = #tpu.pipeline_mode<synchronous>, transform_indices = @transform_1, window_bounds = array<i64: 3, 8, 16>}, {pipeline_mode = #tpu.pipeline_mode<synchronous>, transform_indices = @transform_2, window_bounds = array<i64: 8, 1>}, {pipeline_mode = #tpu.pipeline_mode<synchronous>, transform_indices = @transform_3, window_bounds = array<i64: 8, 1>}, {pipeline_mode = #tpu.pipeline_mode<synchronous>, transform_indices = @transform_4, window_bounds = array<i64: 8, 1>}, {transform_indices = @transform_5, window_bounds = array<i64: 1, 8, 128>}]} {
    %c0_i32 = arith.constant 0 : i32
    %0 = arith.cmpi eq, %arg0, %c0_i32 : i32
    %c0_i32_0 = arith.constant 0 : i32
    %1 = arith.cmpi eq, %arg1, %c0_i32_0 : i32
    %2 = arith.andi %0, %1 : i1
    %c0_i32_1 = arith.constant 0 : i32
    %3 = arith.cmpi eq, %arg2, %c0_i32_1 : i32
    %4 = arith.andi %2, %3 : i1
    %5 = arith.extui %4 : i1 to i32
    %c0_i32_2 = arith.constant 0 : i32
    %6 = arith.cmpi ne, %5, %c0_i32_2 : i32
    scf.if %6 {
      %cst = arith.constant 0.000000e+00 : f32
      %19 = vector.broadcast %cst : f32 to vector<8x1xf32>
      %c0 = arith.constant 0 : index
      %c0_8 = arith.constant 0 : index
      %20 = vector.load %arg10[%c0, %c0_8] : memref<8x1xf32, #tpu.memory_space<vmem>>, vector<8x1xf32>
      tpu.vector_store %arg10[%c0, %c0_8], %19 {strides = array<i32>} : memref<8x1xf32, #tpu.memory_space<vmem>>, vector<8x1xf32>,
      %cst_9 = arith.constant 0.000000e+00 : f32
      %21 = vector.broadcast %cst_9 : f32 to vector<8x1xf32>
      %c0_10 = arith.constant 0 : index
      %c0_11 = arith.constant 0 : index
      %22 = vector.load %arg11[%c0_10, %c0_11] : memref<8x1xf32, #tpu.memory_space<vmem>>, vector<8x1xf32>
      tpu.vector_store %arg11[%c0_10, %c0_11], %21 {strides = array<i32>} : memref<8x1xf32, #tpu.memory_space<vmem>>, vector<8x1xf32>,
    } else {
    }
    %c128_i32 = arith.constant 128 : i32
    %7 = arith.muli %arg2, %c128_i32 : i32
    %8 = tpu.assume_multiple %7, 128 : i32
    %c128_i32_3 = arith.constant 128 : i32
    %9 = arith.muli %arg1, %c128_i32_3 : i32
    %c128_i32_4 = arith.constant 128 : i32
    %10 = arith.muli %arg2, %c128_i32_4 : i32
    %11 = arith.addi %9, %10 : i32
    %12 = tpu.assume_multiple %11, 128 : i32
    %c0_i32_5 = arith.constant 0 : i32
    %13 = arith.cmpi eq, %arg0, %c0_i32_5 : i32
    %14 = arith.extui %13 : i1 to i32
    %c0_i32_6 = arith.constant 0 : i32
    %15 = arith.cmpi ne, %14, %c0_i32_6 : i32
    scf.if %15 {
      %c0 = arith.constant 0 : index
      %c0_8 = arith.constant 0 : index
      %19 = arith.index_cast %8 : i32 to index
      %20 = vector.load %arg3[%c0, %c0_8, %19] : memref<1x16x256xbf16, #tpu.memory_space<vmem>>, vector<1x16x256xbf16>
      %21 = vector.shape_cast %20 : vector<1x16x256xbf16> to vector<16x256xbf16>
      %cst = arith.constant 0.000000e+00 : f32
      %22 = vector.broadcast %cst : f32 to vector<8x128xf32>
      %c0_9 = arith.constant 0 : index
      %c0_10 = arith.constant 0 : index
      %c0_11 = arith.constant 0 : index
      %23 = vector.load %arg4[%c0_9, %c0_10, %c0_11] : memref<3x8x16xbf16, #tpu.memory_space<vmem>>, vector<1x8x16xbf16>
      %24 = vector.shape_cast %23 : vector<1x8x16xbf16> to vector<8x16xbf16>
      %25 = vector.extract_strided_slice %21 {offsets = [0, 0], sizes = [16, 128], strides = [1, 1]} : vector<16x256xbf16> to vector<16x128xbf16>
      %cst_12 = arith.constant dense<0.000000e+00> : vector<8x128xf32>
      %26 = tpu.matmul %24, %25, %cst_12 {dimension_numbers = #tpu.dot_dimension_numbers<[1], [0], [0], [1], [0, 0, 1, 1], [], []>} : vector<8x16xbf16>, vector<16x128xbf16>, vector<8x128xf32> -> vector<8x128xf32>
      %27 = arith.addf %22, %26 : vector<8x128xf32>
      %c1 = arith.constant 1 : index
      %c0_13 = arith.constant 0 : index
      %c0_14 = arith.constant 0 : index
      %28 = vector.load %arg4[%c1, %c0_13, %c0_14] : memref<3x8x16xbf16, #tpu.memory_space<vmem>>, vector<1x8x16xbf16>
      %29 = vector.shape_cast %28 : vector<1x8x16xbf16> to vector<8x16xbf16>
      %30 = vector.extract_strided_slice %21 {offsets = [0, 1], sizes = [16, 128], strides = [1, 1]} : vector<16x256xbf16> to vector<16x128xbf16>
      %cst_15 = arith.constant dense<0.000000e+00> : vector<8x128xf32>
      %31 = tpu.matmul %29, %30, %cst_15 {dimension_numbers = #tpu.dot_dimension_numbers<[1], [0], [0], [1], [0, 0, 1, 1], [], []>} : vector<8x16xbf16>, vector<16x128xbf16>, vector<8x128xf32> -> vector<8x128xf32>
      %32 = arith.addf %27, %31 : vector<8x128xf32>
      %c2 = arith.constant 2 : index
      %c0_16 = arith.constant 0 : index
      %c0_17 = arith.constant 0 : index
      %33 = vector.load %arg4[%c2, %c0_16, %c0_17] : memref<3x8x16xbf16, #tpu.memory_space<vmem>>, vector<1x8x16xbf16>
      %34 = vector.shape_cast %33 : vector<1x8x16xbf16> to vector<8x16xbf16>
      %35 = vector.extract_strided_slice %21 {offsets = [0, 2], sizes = [16, 128], strides = [1, 1]} : vector<16x256xbf16> to vector<16x128xbf16>
      %cst_18 = arith.constant dense<0.000000e+00> : vector<8x128xf32>
      %36 = tpu.matmul %34, %35, %cst_18 {dimension_numbers = #tpu.dot_dimension_numbers<[1], [0], [0], [1], [0, 0, 1, 1], [], []>} : vector<8x16xbf16>, vector<16x128xbf16>, vector<8x128xf32> -> vector<8x128xf32>
      %37 = arith.addf %32, %36 : vector<8x128xf32>
      %c0_i32_19 = arith.constant 0 : i32
      %38 = arith.cmpi slt, %arg2, %c0_i32_19 : i32
      %39 = arith.extui %38 : i1 to i32
      %c0_i32_20 = arith.constant 0 : i32
      %40 = arith.cmpi ne, %39, %c0_i32_20 : i32
      scf.if %40 {
        %c0_26 = arith.constant 0 : index
        %c0_27 = arith.constant 0 : index
        %49 = vector.load %arg10[%c0_26, %c0_27] : memref<8x1xf32, #tpu.memory_space<vmem>>, vector<8x1xf32>
        %cst_28 = arith.constant dense<0.000000e+00> : vector<8xf32>
        %50 = vector.multi_reduction <add>, %37, %cst_28 [1] : vector<8x128xf32> to vector<8xf32>
        %51 = vector.shape_cast %50 : vector<8xf32> to vector<8x1xf32>
        %52 = arith.addf %49, %51 : vector<8x1xf32>
        %c0_29 = arith.constant 0 : index
        %c0_30 = arith.constant 0 : index
        %53 = vector.load %arg10[%c0_29, %c0_30] : memref<8x1xf32, #tpu.memory_space<vmem>>, vector<8x1xf32>
        tpu.vector_store %arg10[%c0_29, %c0_30], %52 {strides = array<i32>} : memref<8x1xf32, #tpu.memory_space<vmem>>, vector<8x1xf32>,
        %c0_31 = arith.constant 0 : index
        %c0_32 = arith.constant 0 : index
        %54 = vector.load %arg11[%c0_31, %c0_32] : memref<8x1xf32, #tpu.memory_space<vmem>>, vector<8x1xf32>
        %55 = arith.mulf %37, %37 : vector<8x128xf32>
        %cst_33 = arith.constant dense<0.000000e+00> : vector<8xf32>
        %56 = vector.multi_reduction <add>, %55, %cst_33 [1] : vector<8x128xf32> to vector<8xf32>
        %57 = vector.shape_cast %56 : vector<8xf32> to vector<8x1xf32>
        %58 = arith.addf %54, %57 : vector<8x1xf32>
        %c0_34 = arith.constant 0 : index
        %c0_35 = arith.constant 0 : index
        %59 = vector.load %arg11[%c0_34, %c0_35] : memref<8x1xf32, #tpu.memory_space<vmem>>, vector<8x1xf32>
        tpu.vector_store %arg11[%c0_34, %c0_35], %58 {strides = array<i32>} : memref<8x1xf32, #tpu.memory_space<vmem>>, vector<8x1xf32>,
      } else {
      }
      %c0_i32_21 = arith.constant 0 : i32
      %41 = arith.cmpi eq, %arg2, %c0_i32_21 : i32
      %42 = arith.extui %41 : i1 to i32
      %c0_i32_22 = arith.constant 0 : i32
      %43 = arith.cmpi ne, %42, %c0_i32_22 : i32
      scf.if %43 {
        %49 = tpu.iota {dimensions = array<i32: 1>} : vector<8x128xi32>
        %c16_i32 = arith.constant 16 : i32
        %50 = vector.broadcast %c16_i32 : i32 to vector<8x128xi32>
        %51 = arith.cmpi slt, %49, %50 : vector<8x128xi32>
        %cst_26 = arith.constant 0.000000e+00 : f32
        %52 = vector.broadcast %cst_26 : f32 to vector<8x128xf32>
        %53 = arith.select %51, %37, %52 : vector<8x128xi1>, vector<8x128xf32>
        %c0_27 = arith.constant 0 : index
        %c0_28 = arith.constant 0 : index
        %54 = vector.load %arg10[%c0_27, %c0_28] : memref<8x1xf32, #tpu.memory_space<vmem>>, vector<8x1xf32>
        %cst_29 = arith.constant dense<0.000000e+00> : vector<8xf32>
        %55 = vector.multi_reduction <add>, %53, %cst_29 [1] : vector<8x128xf32> to vector<8xf32>
        %56 = vector.shape_cast %55 : vector<8xf32> to vector<8x1xf32>
        %57 = arith.addf %54, %56 : vector<8x1xf32>
        %c0_30 = arith.constant 0 : index
        %c0_31 = arith.constant 0 : index
        %58 = vector.load %arg10[%c0_30, %c0_31] : memref<8x1xf32, #tpu.memory_space<vmem>>, vector<8x1xf32>
        tpu.vector_store %arg10[%c0_30, %c0_31], %57 {strides = array<i32>} : memref<8x1xf32, #tpu.memory_space<vmem>>, vector<8x1xf32>,
        %c0_32 = arith.constant 0 : index
        %c0_33 = arith.constant 0 : index
        %59 = vector.load %arg11[%c0_32, %c0_33] : memref<8x1xf32, #tpu.memory_space<vmem>>, vector<8x1xf32>
        %60 = arith.mulf %53, %53 : vector<8x128xf32>
        %cst_34 = arith.constant dense<0.000000e+00> : vector<8xf32>
        %61 = vector.multi_reduction <add>, %60, %cst_34 [1] : vector<8x128xf32> to vector<8xf32>
        %62 = vector.shape_cast %61 : vector<8xf32> to vector<8x1xf32>
        %63 = arith.addf %59, %62 : vector<8x1xf32>
        %c0_35 = arith.constant 0 : index
        %c0_36 = arith.constant 0 : index
        %64 = vector.load %arg11[%c0_35, %c0_36] : memref<8x1xf32, #tpu.memory_space<vmem>>, vector<8x1xf32>
        tpu.vector_store %arg11[%c0_35, %c0_36], %63 {strides = array<i32>} : memref<8x1xf32, #tpu.memory_space<vmem>>, vector<8x1xf32>,
      } else {
      }
      %c0_23 = arith.constant 0 : index
      %c0_24 = arith.constant 0 : index
      %44 = vector.load %arg5[%c0_23, %c0_24] : memref<8x1xf32, #tpu.memory_space<vmem>>, vector<8x1xf32>
      %45 = vector.broadcast %44 : vector<8x1xf32> to vector<8x128xf32>
      %46 = arith.addf %37, %45 : vector<8x128xf32>
      %c0_25 = arith.constant 0 : index
      %47 = arith.index_cast %12 : i32 to index
      %48 = vector.load %arg9[%c0_25, %47] : memref<8x256xf32, #tpu.memory_space<vmem>>, vector<8x128xf32>
      tpu.vector_store %arg9[%c0_25, %47], %46 {strides = array<i32>} : memref<8x256xf32, #tpu.memory_space<vmem>>, vector<8x128xf32>,
    } else {
    }
    %c1_i32 = arith.constant 1 : i32
    %16 = arith.cmpi eq, %arg0, %c1_i32 : i32
    %17 = arith.extui %16 : i1 to i32
    %c0_i32_7 = arith.constant 0 : i32
    %18 = arith.cmpi ne, %17, %c0_i32_7 : i32
    scf.if %18 {
      %c0 = arith.constant 0 : index
      %c0_8 = arith.constant 0 : index
      %19 = vector.load %arg10[%c0, %c0_8] : memref<8x1xf32, #tpu.memory_space<vmem>>, vector<8x1xf32>
      %c0_9 = arith.constant 0 : index
      %c0_10 = arith.constant 0 : index
      %20 = vector.load %arg11[%c0_9, %c0_10] : memref<8x1xf32, #tpu.memory_space<vmem>>, vector<8x1xf32>
      %c0_11 = arith.constant 0 : index
      %c0_12 = arith.constant 0 : index
      %21 = vector.load %arg5[%c0_11, %c0_12] : memref<8x1xf32, #tpu.memory_space<vmem>>, vector<8x1xf32>
      %c0_13 = arith.constant 0 : index
      %c0_14 = arith.constant 0 : index
      %22 = vector.load %arg6[%c0_13, %c0_14] : memref<8x1xf32, #tpu.memory_space<vmem>>, vector<8x1xf32>
      %c0_15 = arith.constant 0 : index
      %c0_16 = arith.constant 0 : index
      %23 = vector.load %arg7[%c0_15, %c0_16] : memref<8x1xf32, #tpu.memory_space<vmem>>, vector<8x1xf32>
      %cst = arith.constant 3.125000e-02 : f32
      %24 = vector.broadcast %cst : f32 to vector<8x1xf32>
      %25 = arith.mulf %19, %24 : vector<8x1xf32>
      %cst_17 = arith.constant 3.125000e-02 : f32
      %26 = vector.broadcast %cst_17 : f32 to vector<8x1xf32>
      %27 = arith.mulf %20, %26 : vector<8x1xf32>
      %28 = arith.mulf %25, %25 : vector<8x1xf32>
      %29 = arith.subf %27, %28 : vector<8x1xf32>
      %cst_18 = arith.constant 9.99999974E-6 : f32
      %30 = vector.broadcast %cst_18 : f32 to vector<8x1xf32>
      %31 = arith.addf %29, %30 : vector<8x1xf32>
      %32 = math.rsqrt %31 : vector<8x1xf32>
      %33 = arith.mulf %22, %32 : vector<8x1xf32>
      %34 = arith.addf %25, %21 : vector<8x1xf32>
      %35 = arith.mulf %34, %33 : vector<8x1xf32>
      %36 = arith.subf %23, %35 : vector<8x1xf32>
      %c0_19 = arith.constant 0 : index
      %37 = arith.index_cast %12 : i32 to index
      %38 = vector.load %arg9[%c0_19, %37] : memref<8x256xf32, #tpu.memory_space<vmem>>, vector<8x128xf32>
      %39 = vector.broadcast %33 : vector<8x1xf32> to vector<8x128xf32>
      %40 = arith.mulf %38, %39 : vector<8x128xf32>
      %41 = vector.broadcast %36 : vector<8x1xf32> to vector<8x128xf32>
      %42 = arith.addf %40, %41 : vector<8x128xf32>
      %cst_20 = arith.constant 0.000000e+00 : f32
      %43 = vector.broadcast %cst_20 : f32 to vector<8x128xf32>
      %44 = arith.maximumf %42, %43 : vector<8x128xf32>
      %c0_21 = arith.constant 0 : index
      %c0_22 = arith.constant 0 : index
      %c0_23 = arith.constant 0 : index
      %45 = vector.load %arg8[%c0_21, %c0_22, %c0_23] : memref<1x8x128xf32, #tpu.memory_space<vmem>>, vector<1x8x128xf32>
      %46 = vector.shape_cast %45 : vector<1x8x128xf32> to vector<8x128xf32>
      %47 = vector.shape_cast %44 : vector<8x128xf32> to vector<1x8x128xf32>
      tpu.vector_store %arg8[%c0_21, %c0_22, %c0_23], %47 {strides = array<i32>} : memref<1x8x128xf32, #tpu.memory_space<vmem>>, vector<1x8x128xf32>,
    } else {
    }
    return
  }
  func.func @transform_0(%arg0: i32, %arg1: i32, %arg2: i32) -> (i32, i32, i32) {
    %c1_i32 = arith.constant 1 : i32
    %0 = arith.subi %c1_i32, %arg0 : i32
    %1 = arith.muli %0, %arg1 : i32
    %c0_i32 = arith.constant 0 : i32
    %c0_i32_0 = arith.constant 0 : i32
    %c0_i32_1 = arith.constant 0 : i32
    return %1, %c0_i32, %c0_i32_0 : i32, i32, i32
  }
  func.func @transform_1(%arg0: i32, %arg1: i32, %arg2: i32) -> (i32, i32, i32) {
    %c0_i32 = arith.constant 0 : i32
    %c0_i32_0 = arith.constant 0 : i32
    %c0_i32_1 = arith.constant 0 : i32
    %c0_i32_2 = arith.constant 0 : i32
    return %c0_i32, %c0_i32_0, %c0_i32_1 : i32, i32, i32
  }
  func.func @transform_2(%arg0: i32, %arg1: i32, %arg2: i32) -> (i32, i32) {
    %c0_i32 = arith.constant 0 : i32
    %c0_i32_0 = arith.constant 0 : i32
    %c0_i32_1 = arith.constant 0 : i32
    return %c0_i32, %c0_i32_0 : i32, i32
  }
  func.func @transform_3(%arg0: i32, %arg1: i32, %arg2: i32) -> (i32, i32) {
    %c0_i32 = arith.constant 0 : i32
    %c0_i32_0 = arith.constant 0 : i32
    %c0_i32_1 = arith.constant 0 : i32
    return %c0_i32, %c0_i32_0 : i32, i32
  }
  func.func @transform_4(%arg0: i32, %arg1: i32, %arg2: i32) -> (i32, i32) {
    %c0_i32 = arith.constant 0 : i32
    %c0_i32_0 = arith.constant 0 : i32
    %c0_i32_1 = arith.constant 0 : i32
    return %c0_i32, %c0_i32_0 : i32, i32
  }
  func.func @transform_5(%arg0: i32, %arg1: i32, %arg2: i32) -> (i32, i32, i32) {
    %0 = arith.muli %arg0, %arg1 : i32
    %1 = arith.muli %arg0, %arg2 : i32
    %c0_i32 = arith.constant 0 : i32
    %c0_i32_0 = arith.constant 0 : i32
    return %0, %c0_i32, %1 : i32, i32, i32
  }
}

</mosaic_0001>

<llo_original>
// kernel: tpu_custom_call.1
$region0: #{tpu_custom_call.1}
  #allocation0 [shape = 'u32[]', space=smem, size = 0x4, offset = 0x4, fixed_abs, tag = 'smem constant byte address 0x4 - core index']
  #allocation1 [shape = 'u32[72,128]{1,0:T(1,128)}', space=vmem, size = 0x9000, scoped, tag = 'internal scratch']
  #allocation2 [shape = 'f32[8,256]{1,0:T(8,128)}', space=vmem, size = 0x2000, scoped, tag = 'scratch operand']
  #allocation3 [shape = 'f32[8,1]{1,0:T(8,128)}', space=vmem, size = 0x1000, scoped, tag = 'scratch operand']
  #allocation4 [shape = 'f32[8,1]{1,0:T(8,128)}', space=vmem, size = 0x1000, scoped, tag = 'scratch operand']
  %s0 = inlined_call_operand.hbm [shape: bf16[2,16,256], index: 0, kind: input, shape index: {}]
  %s1 = inlined_call_operand.vmem [shape: bf16[3,8,16], index: 1, kind: input, shape index: {}]
  %s2 = inlined_call_operand.vmem [shape: f32[8,1], index: 2, kind: input, shape index: {}]
  %s3 = inlined_call_operand.vmem [shape: f32[8,1], index: 3, kind: input, shape index: {}]
  %s4 = inlined_call_operand.vmem [shape: f32[8,1], index: 4, kind: input, shape index: {}]
  %s5 = inlined_call_operand.hbm [shape: f32[2,8,128], index: 5, kind: output, shape index: {}]
  %s6 = sld [smem:[#allocation0]]
  $region77: #{tpu_custom_call.1} parent=0
    _
  %s8 = ssub.s32 1, %s6
  %s9 = scalar_select 0, %s8, %s6
  $region1: #{tpu_custom_call.1} parent=0
    #allocation5 [shape = 'u8[16384]{0}', space=vmem, size = 0x4000, scoped, tag = 'input window, operand 0']
    #allocation6 [shape = 's32[2]{0}', space=sflag, size = 0x8, scoped, tag = 'scoped memory for tpu_custom_call.1']
    #allocation7 [shape = 's32[2]{0}', space=sflag, size = 0x8, scoped, tag = 'scoped memory for tpu_custom_call.1']
    #allocation8 [shape = 'u8[8192]{0}', space=vmem, size = 0x2000, scoped, tag = 'output window, operand 0']
    %10 = vsyncpa [#allocation6], 0
    %s11 = scalar_lea.sflag [#allocation6], 1
    %12 = vsyncpa %s11, 0
    %13 = vsyncpa [#allocation7], 0
    %s14 = scalar_lea.sflag [#allocation7], 1
    %15 = vsyncpa %s14, 0
    loop: start=0, step=1, limit=6
    $region2: #{tpu_custom_call.1} parent=1 // loop_pre_header
      _
    $region3: #{tpu_custom_call.1} parent=1 // loop_header
      %s17 = sphi 0, %s21
      %p18 = scmp.ge.s32.totalorder %s17, 6
      %s24 = sphi 0, %s43
      %s25 = sphi 0, %s39
      %s26 = sphi 0, %s35
      %s27 = sphi 0, %s24
      %s28 = sphi 0, %s25
      %s29 = sphi 0, %s26
      %s30 = sphi 0, %s27
      %s31 = sphi 0, %s28
      %s32 = sphi 0, %s29
      %s50 = sphi 0, %s52
      %s53 = sphi 0, %s50
      %s54 = sphi 0, %s53
      %s70 = sphi 0, %s54
      %s74 = sphi 0, %s74
      %s76 = sphi 0, %s74
      %s77 = sphi 0, %s76
      %s91 = sphi 0, %s77
      %s95 = sphi 0, %s95
      %s97 = sphi 0, %s95
      %s98 = sphi 0, %s97
      %s112 = sphi 0, %s98
      %s116 = sphi 0, %s116
      %s118 = sphi 0, %s116
      %s119 = sphi 0, %s118
      %s133 = sphi 0, %s119
      %s137 = sphi 0, %s137
      %s139 = sphi 0, %s137
      %s140 = sphi 0, %s139
      %s154 = sphi 0, %s140
      %s166 = sphi 0, %s168
      %s169 = sphi 0, %s166
      %s170 = sphi 0, %s169
      %s186 = sphi 0, %s170
    $region4: #{tpu_custom_call.1} parent=1 // loop_header_branch
      %20 = sbr.rel (%p18) target = $region8
    $region5: #{tpu_custom_call.1} parent=1 // loop_body
      %s22 = ssub.s32 %s17, 1
      %s23 = ssub.s32 %s17, 2
      %s33 = sadd.s32 1, %s26
      %p34 = scmp.ge.s32.totalorder %s33, 1
      %s35 = scalar_select %p34, 0, %s33
      %s36 = sadd.s32 1, %s25
      %s37 = scalar_select %p34, %s36, %s25
      %p38 = scmp.ge.s32.totalorder %s37, 2
      %s39 = scalar_select %p38, 0, %s37
      %s40 = sadd.s32 1, %s24
      %s41 = scalar_select %p38, %s40, %s24
      %p42 = scmp.ge.s32.totalorder %s41, 2
      %s43 = scalar_select %p42, 0, %s41
      %s44 = ssub.s32 1, %s24
      %s45 = smul.u32 %s44, %s25
      %s46 = ssub.s32 1, %s43
      %s47 = smul.u32 %s46, %s39
      %s48 = ssub.s32 %s45, %s47
      %p49 = scmp.eq.s32.totalorder %s48, 0
      %s51 = sadd.s32 %s50, 1
      %s52 = scalar_select %p49, %s50, %s51
      %p55 = pneg %p49
      %p56 = scmp.eq.s32.totalorder %s17, 3
      %p57 = por %p55, %p56
      %p58 = scmp.ne.s32.totalorder %s50, %s53
      %p59 = scmp.eq.s32.totalorder %s17, 0
      %p60 = por %p58, %p59
      %p61 = scmp.ne.s32.totalorder %s50, %s53
      %p62 = scmp.eq.s32.totalorder %s22, 3
      %p63 = por %p61, %p62
      %p64 = scmp.ne.s32.totalorder %s53, %s54
      %p65 = scmp.eq.s32.totalorder %s22, 0
      %p66 = por %p64, %p65
      %p67 = scmp.ne.s32.totalorder %s53, %s54
      %p68 = scmp.eq.s32.totalorder %s23, 3
      %p69 = por %p67, %p68
      %p71 = scmp.ne.s32.totalorder %s54, %s70
      %p72 = scmp.eq.s32.totalorder %s23, 0
      %p73 = por %p71, %p72
      %s75 = sadd.s32 %s74, 1
      %p78 = scmp.eq.s32.totalorder %s17, 3
      %p79 = scmp.ne.s32.totalorder %s74, %s76
      %p80 = scmp.eq.s32.totalorder %s17, 0
      %p81 = por %p79, %p80
      %p82 = scmp.ne.s32.totalorder %s74, %s76
      %p83 = scmp.eq.s32.totalorder %s22, 3
      %p84 = por %p82, %p83
      %p85 = scmp.ne.s32.totalorder %s76, %s77
      %p86 = scmp.eq.s32.totalorder %s22, 0
      %p87 = por %p85, %p86
      %p88 = scmp.ne.s32.totalorder %s76, %s77
      %p89 = scmp.eq.s32.totalorder %s23, 3
      %p90 = por %p88, %p89
      %p92 = scmp.ne.s32.totalorder %s77, %s91
      %p93 = scmp.eq.s32.totalorder %s23, 0
      %p94 = por %p92, %p93
      %s96 = sadd.s32 %s95, 1
      %p99 = scmp.eq.s32.totalorder %s17, 3
      %p100 = scmp.ne.s32.totalorder %s95, %s97
      %p101 = scmp.eq.s32.totalorder %s17, 0
      %p102 = por %p100, %p101
      %p103 = scmp.ne.s32.totalorder %s95, %s97
      %p104 = scmp.eq.s32.totalorder %s22, 3
      %p105 = por %p103, %p104
      %p106 = scmp.ne.s32.totalorder %s97, %s98
      %p107 = scmp.eq.s32.totalorder %s22, 0
      %p108 = por %p106, %p107
      %p109 = scmp.ne.s32.totalorder %s97, %s98
      %p110 = scmp.eq.s32.totalorder %s23, 3
      %p111 = por %p109, %p110
      %p113 = scmp.ne.s32.totalorder %s98, %s112
      %p114 = scmp.eq.s32.totalorder %s23, 0
      %p115 = por %p113, %p114
      %s117 = sadd.s32 %s116, 1
      %p120 = scmp.eq.s32.totalorder %s17, 3
      %p121 = scmp.ne.s32.totalorder %s116, %s118
      %p122 = scmp.eq.s32.totalorder %s17, 0
      %p123 = por %p121, %p122
      %p124 = scmp.ne.s32.totalorder %s116, %s118
      %p125 = scmp.eq.s32.totalorder %s22, 3
      %p126 = por %p124, %p125
      %p127 = scmp.ne.s32.totalorder %s118, %s119
      %p128 = scmp.eq.s32.totalorder %s22, 0
      %p129 = por %p127, %p128
      %p130 = scmp.ne.s32.totalorder %s118, %s119
      %p131 = scmp.eq.s32.totalorder %s23, 3
      %p132 = por %p130, %p131
      %p134 = scmp.ne.s32.totalorder %s119, %s133
      %p135 = scmp.eq.s32.totalorder %s23, 0
      %p136 = por %p134, %p135
      %s138 = sadd.s32 %s137, 1
      %p141 = scmp.eq.s32.totalorder %s17, 3
      %p142 = scmp.ne.s32.totalorder %s137, %s139
      %p143 = scmp.eq.s32.totalorder %s17, 0
      %p144 = por %p142, %p143
      %p145 = scmp.ne.s32.totalorder %s137, %s139
      %p146 = scmp.eq.s32.totalorder %s22, 3
      %p147 = por %p145, %p146
      %p148 = scmp.ne.s32.totalorder %s139, %s140
      %p149 = scmp.eq.s32.totalorder %s22, 0
      %p150 = por %p148, %p149
      %p151 = scmp.ne.s32.totalorder %s139, %s140
      %p152 = scmp.eq.s32.totalorder %s23, 3
      %p153 = por %p151, %p152
      %p155 = scmp.ne.s32.totalorder %s140, %s154
      %p156 = scmp.eq.s32.totalorder %s23, 0
      %p157 = por %p155, %p156
      %s158 = smul.u32 %s24, %s25
      %s159 = smul.u32 %s24, %s26
      %s160 = smul.u32 %s43, %s39
      %s161 = smul.u32 %s43, %s35
      %s162 = ssub.s32 %s158, %s160
      %s163 = ssub.s32 %s159, %s161
      %s164 = sor.u32 %s162, %s163
      %p165 = scmp.eq.s32.totalorder %s164, 0
      %s167 = sadd.s32 %s166, 1
      %s168 = scalar_select %p165, %s166, %s167
      %p171 = pneg %p165
      %p172 = scmp.eq.s32.totalorder %s17, 3
      %p173 = por %p171, %p172
      %p174 = scmp.ne.s32.totalorder %s166, %s169
      %p175 = scmp.eq.s32.totalorder %s17, 0
      %p176 = por %p174, %p175
      %p177 = scmp.ne.s32.totalorder %s166, %s169
      %p178 = scmp.eq.s32.totalorder %s22, 3
      %p179 = por %p177, %p178
      %p180 = scmp.ne.s32.totalorder %s169, %s170
      %p181 = scmp.eq.s32.totalorder %s22, 0
      %p182 = por %p180, %p181
      %p183 = scmp.ne.s32.totalorder %s169, %s170
      %p184 = scmp.eq.s32.totalorder %s23, 3
      %p185 = por %p183, %p184
      %p187 = scmp.ne.s32.totalorder %s170, %s186
      %p188 = scmp.eq.s32.totalorder %s23, 0
      %p189 = por %p187, %p188
      %p190 = scmp.le.s32.totalorder 1, %s17
      %p191 = scmp.lt.s32.totalorder %s17, 5
      %p192 = pnand %p190, %p191
      %p193 = pneg %p192
      // Predicated region
      $region9: #{tpu_custom_call.1} parent=5 // pred_check
        _
      $region10: #{tpu_custom_call.1} parent=5 // pred_check_branch
        %195 = sbr.rel (%p192) target = $region12
      $region11: #{tpu_custom_call.1} parent=5 // pred_region
        %s196 = ssub.s32 %s17, 1
        // Predicated region
        $region13: #{tpu_custom_call.1} parent=11 // pred_check
          %p197 = pneg %p87
        $region14: #{tpu_custom_call.1} parent=11 // pred_check_branch
          %199 = sbr.rel (%p197) target = $region16
        $region15: #{tpu_custom_call.1} parent=11 // pred_region
          _
        $region16: #{tpu_custom_call.1} parent=11 // pred_fallthru
          _
        // Predicated region
        $region17: #{tpu_custom_call.1} parent=11 // pred_check
          %p200 = pneg %p108
        $region18: #{tpu_custom_call.1} parent=11 // pred_check_branch
          %202 = sbr.rel (%p200) target = $region20
        $region19: #{tpu_custom_call.1} parent=11 // pred_region
          _
        $region20: #{tpu_custom_call.1} parent=11 // pred_fallthru
          _
        // Predicated region
        $region21: #{tpu_custom_call.1} parent=11 // pred_check
          %p203 = pneg %p129
        $region22: #{tpu_custom_call.1} parent=11 // pred_check_branch
          %205 = sbr.rel (%p203) target = $region24
        $region23: #{tpu_custom_call.1} parent=11 // pred_region
          _
        $region24: #{tpu_custom_call.1} parent=11 // pred_fallthru
          _
        // Predicated region
        $region25: #{tpu_custom_call.1} parent=11 // pred_check
          %p206 = pneg %p150
        $region26: #{tpu_custom_call.1} parent=11 // pred_check_branch
          %208 = sbr.rel (%p206) target = $region28
        $region27: #{tpu_custom_call.1} parent=11 // pred_region
          _
        $region28: #{tpu_custom_call.1} parent=11 // pred_fallthru
          _
      $region12: #{tpu_custom_call.1} parent=5 // pred_fallthru
        _
      %p209 = scmp.lt.s32.totalorder %s17, 4
      // Predicated region
      $region29: #{tpu_custom_call.1} parent=5 // pred_check
        %p210 = pneg %p209
      $region30: #{tpu_custom_call.1} parent=5 // pred_check_branch
        %212 = sbr.rel (%p210) target = $region32
      $region31: #{tpu_custom_call.1} parent=5 // pred_region
        // Predicated region
        $region33: #{tpu_custom_call.1} parent=31 // pred_check
          %p213 = pneg %p60
        $region34: #{tpu_custom_call.1} parent=31 // pred_check_branch
          %215 = sbr.rel (%p213) target = $region36
        $region35: #{tpu_custom_call.1} parent=31 // pred_region
          %s216 = sand.u32 %s50, 1
          %s217 = scalar_lea.sflag [#allocation6], %s216
          %s218 = sand.u32 %s50, 1
          %s219 = smul.addr %s218, 16
          %s220 = scalar_lea.vmem [#allocation5], %s219
          %s221 = ssub.s32 1, %s24
          %s222 = smul.u32 %s221, %s25
          %224 = vsyncadd %s217, 0
          %s225 = smul.addr %s222, 4
          %s226 = smul.addr %s225, 4
          %s227 = scalar_lea.hbm %s0, %s226
          %s228 = sshll.u32 %s227, 4
          %s229 = int_to_ptr.hbm [resolvable:$true] %s228
          %s230 = sshll.u32 %s220, 4
          %s231 = int_to_ptr.vmem [resolvable:$true] %s230
          %236 = dma.hbm_to_vmem [thread:$0]  %s229, 256, %s231, %s217, 128, 128, 8
        $region36: #{tpu_custom_call.1} parent=31 // pred_fallthru
          _
      $region32: #{tpu_custom_call.1} parent=5 // pred_fallthru
        _
      %p237 = scmp.le.s32.totalorder 1, %s17
      %p238 = scmp.lt.s32.totalorder %s17, 5
      %p239 = pnand %p237, %p238
      %p240 = pneg %p239
      // Predicated region
      $region37: #{tpu_custom_call.1} parent=5 // pred_check
        _
      $region38: #{tpu_custom_call.1} parent=5 // pred_check_branch
        %242 = sbr.rel (%p239) target = $region40
      $region39: #{tpu_custom_call.1} parent=5 // pred_region
        %s243 = ssub.s32 %s17, 1
        %s244 = sand.u32 %s53, 1
        %s245 = scalar_lea.sflag [#allocation6], %s244
        %s246 = sand.u32 %s53, 1
        %s247 = smul.addr %s246, 16
        %s248 = scalar_lea.vmem [#allocation5], %s247
        // Predicated region
        $region41: #{tpu_custom_call.1} parent=39 // pred_check
          %p249 = pneg %p66
        $region42: #{tpu_custom_call.1} parent=39 // pred_check_branch
          %251 = sbr.rel (%p249) target = $region44
        $region43: #{tpu_custom_call.1} parent=39 // pred_region
          %253 = dma.done %s245, 256
        $region44: #{tpu_custom_call.1} parent=39 // pred_fallthru
          _
        %s254 = sand.u32 %s53, 1
        %s255 = scalar_lea.sflag [#allocation6], %s254
        %s256 = sand.u32 %s53, 1
        %s257 = smul.addr %s256, 16
        %s258 = scalar_lea.vmem [#allocation5], %s257
        %p259 = pneg %p66
        %p260 = pneg %p63
        %p261 = pneg %p87
        %p262 = pneg %p84
        %p263 = pneg %p108
        %p264 = pneg %p105
        %p265 = pneg %p129
        %p266 = pneg %p126
        %p267 = pneg %p150
        %p268 = pneg %p147
        %p269 = pneg %p182
        %p270 = pneg %p179
        %s271 = sand.u32 %s169, 1
        %s272 = scalar_lea.sflag [#allocation7], %s271
        %s273 = sand.u32 %s169, 1
        %s274 = smul.addr %s273, 8
        %s275 = scalar_lea.vmem [#allocation8], %s274
        %s276 = ssub.s32 1, %s27
        %s277 = smul.u32 %s276, %s28
        %s278 = smul.u32 %s27, %s28
        %s279 = smul.u32 %s27, %s29
        %p281 = scmp.eq.s32.totalorder %s27, 0
        %p282 = scmp.eq.s32.totalorder %s28, 0
        %p283 = pnand %p281, %p282
        %p284 = pneg %p283
        %p285 = scmp.eq.s32.totalorder %s29, 0
        %p286 = pnand %p284, %p285
        %p287 = pneg %p286
        // Predicated region
        $region45: #{tpu_custom_call.1} parent=39 // pred_check
          _
        $region46: #{tpu_custom_call.1} parent=39 // pred_check_branch
          %289 = sbr.rel (%p286) target = $region48
        $region47: #{tpu_custom_call.1} parent=39 // pred_region
          %vm290 = vcmask 7168
          %291 = vst.msk [vmem:[#allocation3] sm:$0xff] %vm290, 0.0
          %292 = vst.msk [vmem:[#allocation4] sm:$0xff] %vm290, 0.0
        $region48: #{tpu_custom_call.1} parent=39 // pred_fallthru
          _
        %s293 = smul.u32 %s29, 128
        %s294 = smul.u32 %s28, 128
        %s295 = sadd.s32 %s294, %s293
        // Predicated region
        $region49: #{tpu_custom_call.1} parent=39 // pred_check
          %p296 = pneg %p281
        $region50: #{tpu_custom_call.1} parent=39 // pred_check_branch
          %298 = sbr.rel (%p296) target = $region52
        $region51: #{tpu_custom_call.1} parent=39 // pred_region
          %s299 = sshra.s32 %s293, 7
          %s300 = sand.u32 %s293, 127
          %s301 = smul.addr %s299, 4
          %s302 = scalar_lea.vmem %s248, %s301 [#allocation5]
          %v303 = vld [vmem:[%s302] sm:$0xff]
          %v304 = vld [vmem:[%s302 + $0x8] sm:$0xff]
          %v305 = vld [vmem:[%s1] sm:$0xf]
          %s306 = scalar_lea.vmem %s1, 4
          %v307 = vld [vmem:[%s306] sm:$0xf]
          %v310 = vunpack.c.l.b16 %v303
          %v311 = vunpack.c.h.b16 %v303
          %v312 = vunpack.c.l.b16 %v304
          %v313 = vunpack.c.h.b16 %v304
          %v314 = vpack.c.b16 %v312, %v310
          %v315 = vpack.c.b16 %v313, %v311
          %316 = vrot.lane.b32.xlu0 %v314, 127
          %v317 = vpop.permute.xlu0 %316
          %318 = vrot.lane.b32.xlu0 %v315, 127
          %v319 = vpop.permute.xlu0 %318
          %vm320 = vcmask 1039360
          %v321 = vsel %vm320, %v317, %v319
          %vm323 = vcmask 130048
          %v325 = vsel %vm323, %v307, 0
          %327 = vmatpush.bf16.msra.mxu0 0
          %328 = vmatpush.bf16.msra.mxu0 0
          %329 = vmatpush.bf16.msra.mxu0 0
          %330 = vmatpush.bf16.msra.mxu0 0
          %331 = vmatpush.bf16.msra.mxu0 0
          %332 = vmatpush.bf16.msra.mxu0 0
          %333 = vmatpush.bf16.msra.mxu0 0
          %334 = vmatpush.bf16.msra.mxu0 %v321
          %335 = vmatmul.bf16.gmra.mxu0 %v325
          %v336 = vpop.f32.mrf.mxu0
          %v337 = vadd.f32 0.0, %v336
          %v338 = vpop.f32.mrf.mxu0
          %339 = vdwg.mxu0
          %v342 = vsel %vm323, %v305, 0
          %344 = vmatpush.bf16.msra.mxu0 0
          %345 = vmatpush.bf16.msra.mxu0 0
          %346 = vmatpush.bf16.msra.mxu0 0
          %347 = vmatpush.bf16.msra.mxu0 0
          %348 = vmatpush.bf16.msra.mxu0 0
          %349 = vmatpush.bf16.msra.mxu0 0
          %350 = vmatpush.bf16.msra.mxu0 0
          %351 = vmatpush.bf16.msra.mxu0 %v314
          %352 = vmatmul.bf16.gmra.mxu0 %v342
          %v353 = vpop.f32.mrf.mxu0
          %v354 = vadd.f32 %v337, %v353
          %v355 = vpop.f32.mrf.mxu0
          %356 = vdwg.mxu0
          %s357 = scalar_lea.vmem %s1, 8
          %v358 = vld [vmem:[%s357] sm:$0xf]
          %359 = vrot.lane.b32.xlu0 %v314, 126
          %v360 = vpop.permute.xlu0 %359
          %361 = vrot.lane.b32.xlu0 %v315, 126
          %v362 = vpop.permute.xlu0 %361
          %vm363 = vcmask 1031168
          %v364 = vsel %vm363, %v360, %v362
          %v367 = vsel %vm323, %v358, 0
          %369 = vmatpush.bf16.msra.mxu0 0
          %370 = vmatpush.bf16.msra.mxu0 0
          %371 = vmatpush.bf16.msra.mxu0 0
          %372 = vmatpush.bf16.msra.mxu0 0
          %373 = vmatpush.bf16.msra.mxu0 0
          %374 = vmatpush.bf16.msra.mxu0 0
          %375 = vmatpush.bf16.msra.mxu0 0
          %376 = vmatpush.bf16.msra.mxu0 %v364
          %377 = vmatmul.bf16.gmra.mxu0 %v367
          %v378 = vpop.f32.mrf.mxu0
          %v379 = vadd.f32 0.0, %v378
          %v380 = vpop.f32.mrf.mxu0
          %381 = vdwg.mxu0
          %v382 = vadd.f32 %v354, %v379
          %p383 = scmp.lt.s32.totalorder %s29, 0
          // Predicated region
          $region53: #{tpu_custom_call.1} parent=51 // pred_check
            %p384 = pneg %p383
          $region54: #{tpu_custom_call.1} parent=51 // pred_check_branch
            %386 = sbr.rel (%p384) target = $region56
          $region55: #{tpu_custom_call.1} parent=51 // pred_region
            %v387 = vld [vmem:[#allocation3] sm:$0xff]
            %388 = vadd.xlane.f32.xlu0 %v382
            %v389 = vpop.xlane.xlu0 %388
            %v390 = vadd.f32 %v387, %v389
            %vm391 = vcmask 7168
            %392 = vst.msk [vmem:[#allocation3] sm:$0xff] %vm391, %v390
            %v393 = vld [vmem:[#allocation4] sm:$0xff]
            %v394 = vmul.f32 %v382, %v382
            %395 = vadd.xlane.f32.xlu0 %v394
            %v396 = vpop.xlane.xlu0 %395
            %v397 = vadd.f32 %v393, %v396
            %398 = vst.msk [vmem:[#allocation4] sm:$0xff] %vm391, %v397
          $region56: #{tpu_custom_call.1} parent=51 // pred_fallthru
            _
          // Predicated region
          $region57: #{tpu_custom_call.1} parent=51 // pred_check
            %p399 = pneg %p285
          $region58: #{tpu_custom_call.1} parent=51 // pred_check_branch
            %401 = sbr.rel (%p399) target = $region60
          $region59: #{tpu_custom_call.1} parent=51 // pred_region
            %v402 = vlaneseq
            %v403 = vand.u32 %v402, 127
            %vm404 = vcmp.lt.s32.totalorder %v403, 16
            %v405 = vsel %vm404, %v382, 0.0
            %v406 = vld [vmem:[#allocation3] sm:$0xff]
            %407 = vadd.xlane.f32.xlu0 %v405
            %v408 = vpop.xlane.xlu0 %407
            %v409 = vadd.f32 %v406, %v408
            %vm410 = vcmask 7168
            %411 = vst.msk [vmem:[#allocation3] sm:$0xff] %vm410, %v409
            %v412 = vld [vmem:[#allocation4] sm:$0xff]
            %v413 = vmul.f32 %v405, %v405
            %414 = vadd.xlane.f32.xlu0 %v413
            %v415 = vpop.xlane.xlu0 %414
            %v416 = vadd.f32 %v412, %v415
            %417 = vst.msk [vmem:[#allocation4] sm:$0xff] %vm410, %v416
          $region60: #{tpu_custom_call.1} parent=51 // pred_fallthru
            _
          %v418 = vld [vmem:[%s2] sm:$0xff]
          %420 = vset.pattern.permute.xlu0 0
          %421 = vperm.xlu0 %420, %v418
          %v422 = vpop.permute.xlu0 %421
          %v424 = vadd.f32 %v382, %v422
          %s425 = sshra.s32 %s295, 7
          %s426 = sand.u32 %s295, 127
          %s427 = smul.addr %s425, 8
          %s428 = scalar_lea.vmem [#allocation2], %s427
          %429 = vst [vmem:[%s428] sm:$0xff] %v424
        $region52: #{tpu_custom_call.1} parent=39 // pred_fallthru
          _
        %p430 = scmp.eq.s32.totalorder %s27, 1
        // Predicated region
        $region61: #{tpu_custom_call.1} parent=39 // pred_check
          %p431 = pneg %p430
        $region62: #{tpu_custom_call.1} parent=39 // pred_check_branch
          %433 = sbr.rel (%p431) target = $region64
        $region63: #{tpu_custom_call.1} parent=39 // pred_region
          %v434 = vld [vmem:[#allocation3] sm:$0xff]
          %v435 = vld [vmem:[#allocation4] sm:$0xff]
          %v436 = vld [vmem:[%s2] sm:$0xff]
          %v437 = vld [vmem:[%s3] sm:$0xff]
          %v438 = vld [vmem:[%s4] sm:$0xff]
          %v439 = vmul.f32 %v434, 0.03125
          %v440 = vmul.f32 %v435, 0.03125
          %v441 = vmul.f32 %v439, %v439
          %v442 = vsub.f32 %v440, %v441
          %v443 = vadd.f32 %v442, 1e-05
          %v444 = vrsqrt.pop %v443
          %v445 = vmul.f32 %v444, %v443
          %v446 = vmul.f32 %v445, %v444
          %v447 = vmul.f32 0.5, %v446
          %v448 = vsub.f32 1.5, %v447
          %v449 = vmul.f32 %v444, %v448
          %vm450 = vweird.f32 %v443
          %vm451 = vweird.f32 %v444
          %vm452 = vmor %vm450, %vm451
          %v453 = vsel %vm452, %v444, %v449
          %v454 = vmul.f32 %v437, %v453
          %v455 = vadd.f32 %v439, %v436
          %v456 = vmul.f32 %v455, %v454
          %v457 = vsub.f32 %v438, %v456
          %s458 = sshra.s32 %s295, 7
          %s459 = sand.u32 %s295, 127
          %s460 = smul.addr %s458, 8
          %s461 = scalar_lea.vmem [#allocation2], %s460
          %v462 = vld [vmem:[%s461] sm:$0xff]
          %464 = vset.pattern.permute.xlu0 0
          %465 = vperm.xlu0 %464, %v454
          %v466 = vpop.permute.xlu0 %465
          %v468 = vmul.f32 %v462, %v466
          %470 = vset.pattern.permute.xlu0 0
          %471 = vperm.xlu0 %470, %v457
          %v472 = vpop.permute.xlu0 %471
          %v474 = vadd.f32 %v468, %v472
          %v475 = vmax.f32 %v474, 0.0
          %476 = vst [vmem:[%s275] sm:$0xff] %v475
        $region64: #{tpu_custom_call.1} parent=39 // pred_fallthru
          _
        %s477 = sand.u32 %s169, 1
        %s478 = scalar_lea.sflag [#allocation7], %s477
        %s479 = sand.u32 %s169, 1
        %s480 = smul.addr %s479, 8
        %s481 = scalar_lea.vmem [#allocation8], %s480
        // Predicated region
        $region65: #{tpu_custom_call.1} parent=39 // pred_check
          %p482 = pneg %p179
        $region66: #{tpu_custom_call.1} parent=39 // pred_check_branch
          %484 = sbr.rel (%p482) target = $region68
        $region67: #{tpu_custom_call.1} parent=39 // pred_region
          %s485 = smul.u32 %s27, %s28
          %s486 = smul.u32 %s27, %s29
          %488 = vsyncadd %s478, 0
          %s489 = sadd.s32 %s486, %s485
          %s490 = smul.addr %s489, 8
          %s491 = scalar_lea.hbm %s5, %s490
          %s493 = sshll.u32 %s481, 4
          %s494 = int_to_ptr.vmem [resolvable:$true] %s493
          %s495 = sshll.u32 %s491, 4
          %s496 = int_to_ptr.hbm [resolvable:$true] %s495
          %498 = dma.vmem_to_hbm [thread:$0]  %s494, 128, %s496, %s478
        $region68: #{tpu_custom_call.1} parent=39 // pred_fallthru
          _
      $region40: #{tpu_custom_call.1} parent=5 // pred_fallthru
        _
      %p499 = scmp.le.s32.totalorder 2, %s17
      // Predicated region
      $region69: #{tpu_custom_call.1} parent=5 // pred_check
        %p500 = pneg %p499
      $region70: #{tpu_custom_call.1} parent=5 // pred_check_branch
        %502 = sbr.rel (%p500) target = $region72
      $region71: #{tpu_custom_call.1} parent=5 // pred_region
        %s503 = ssub.s32 %s17, 2
        // Predicated region
        $region73: #{tpu_custom_call.1} parent=71 // pred_check
          %p504 = pneg %p185
        $region74: #{tpu_custom_call.1} parent=71 // pred_check_branch
          %506 = sbr.rel (%p504) target = $region76
        $region75: #{tpu_custom_call.1} parent=71 // pred_region
          %s507 = sand.u32 %s170, 1
          %s508 = scalar_lea.sflag [#allocation7], %s507
          %s509 = sand.u32 %s170, 1
          %s510 = smul.addr %s509, 8
          %s511 = scalar_lea.vmem [#allocation8], %s510
          %513 = dma.done %s508, 128
        $region76: #{tpu_custom_call.1} parent=71 // pred_fallthru
          _
      $region72: #{tpu_custom_call.1} parent=5 // pred_fallthru
        _
    $region6: #{tpu_custom_call.1} parent=1 // loop_footer
      %s21 = sadd.s32 1, %s17
    $region7: #{tpu_custom_call.1} parent=1 // loop_footer_branch
      %16 = sbr.rel target = $region3
    $region8: #{tpu_custom_call.1} parent=1 // loop_exit
      _
    %514 = vsyncpa [#allocation6], 1
    %s515 = scalar_lea.sflag [#allocation6], 1
    %516 = vsyncpa %s515, 1
    %517 = vsyncpa [#allocation7], 1
    %s518 = scalar_lea.sflag [#allocation7], 1
    %519 = vsyncpa %s518, 1

</llo_original>
